<compile_context>
chip_gen: v7x
topology: tpu7x:2x2x1
jax: 0.10.0
libtpu: 0.0.40
codegen_flags: <defaults>
</compile_context>

<pallas_src>
import jax
import jax.numpy as jnp
from jax.experimental import pallas as pl
from jax.experimental.pallas import tpu as pltpu

IN_FEAT = 512     # CLIP image-feature dim
EMB_DIM = 256     # nn.Linear(512, emb_dim=256)
BN_EPS = 1e-5     # nn.BatchNorm1d default eps

MAX_TK = 4096     # reduction-tile cap (perf review: 2048-4096)
MAX_TM = 512      # batch-tile cap (keeps double-buffered x tile <= 16 MiB)


def _round_up(x, m):
    return -(-x // m) * m


# ----------------------------------------------------------------------------
# Kernel: out[m-tile, :] = sum_k bf16(x[m-tile, k-tile]) @ w_comb[k-tile, :]
#                          (+ folded Linear/BN bias)
# grid = (M tiles over batch : 'parallel', K tiles over C*H*W : 'arbitrary').
# The output block index ignores k, so o_ref stays VMEM-resident across the
# whole reduction and is written to HBM exactly once per M tile.  Keep the K
# axis LAST and 'arbitrary' -- reordering the grid breaks this accumulator.
# ----------------------------------------------------------------------------
def fused_encoder_kernel(x_ref, w_ref, b_ref, o_ref):
    k = pl.program_id(1)
    # f32 activations -> bf16 on the VPU just before the MXU dot; f32 acc.
    partial = jnp.dot(x_ref[...].astype(jnp.bfloat16), w_ref[...],
                      preferred_element_type=jnp.float32)

    @pl.when(k == 0)
    def _first():
        # Direct assign (no zero-fill / read-modify-write).  Bias = Linear bias
        # with eval-BN shift folded in; adding it on the first step is exact.
        o_ref[...] = partial + b_ref[...]

    @pl.when(k > 0)
    def _accumulate():
        o_ref[...] += partial


# ----------------------------------------------------------------------------
# Host-side, one-time weight preparation (call OUTSIDE the jitted forward).
# ----------------------------------------------------------------------------
def prepare_params(raw_params):
    # eval-mode BatchNorm1d folded into the Linear(512 -> 256) head.
    inv = raw_params["bn_gamma"] * jax.lax.rsqrt(raw_params["bn_var"] + BN_EPS)
    w_head = raw_params["w_lin"].astype(jnp.float32) * inv[None, :]   # (512, 256)
    b_head = ((raw_params["b_lin"] - raw_params["bn_mean"]) * inv
              + raw_params["bn_beta"]).reshape(1, EMB_DIM).astype(jnp.float32)

    # Linear CLIP stand-in precomposed with the folded head (compose in f32,
    # store bf16): halves the dominant HBM stream vs streaming w_clip.
    # TODO(synk): only valid while the CLIP stand-in is linear.
    w_comb = raw_params["w_clip"].astype(jnp.float32) @ w_head        # (k_in, 256)
    k_in = w_comb.shape[0]
    k_pad = _round_up(k_in, 128)
    if k_pad != k_in:
        w_comb = jnp.pad(w_comb, ((0, k_pad - k_in), (0, 0)))
    return {
        "w_comb": w_comb.astype(jnp.bfloat16),   # (k_pad, 256) bf16
        "b_head": b_head,                        # (1, 256)     f32
    }


def _choose_tk(k_pad):
    """Largest multiple of 128 that divides k_pad, capped at MAX_TK."""
    tk = min(MAX_TK, k_pad)
    tk -= tk % 128
    while k_pad % tk != 0:
        tk -= 128
    return tk


def _choose_tm(batch):
    """One big batch tile where possible so w_comb is re-streamed from HBM as
    few times as possible (its block index changes every K step)."""
    return min(_round_up(max(batch, 1), 16), MAX_TM)


def image_encoder_clip_forward(images, prepared):
    """images: (B, C, H, W) float (NCHW).  Returns (B, EMB_DIM) float32."""
    B = images.shape[0]
    flat = images.reshape(B, -1).astype(jnp.float32)       # free reshape under jit
    k_in = flat.shape[1]

    w_comb = prepared["w_comb"]                             # (k_pad, 256) bf16
    b_head = prepared["b_head"]                             # (1, 256)     f32
    k_pad = w_comb.shape[0]

    TK = _choose_tk(k_pad)
    TM = _choose_tm(B)
    b_pad = _round_up(B, TM)

    # Only a <=15-row / <=127-col remainder ever gets padded per call; TK is
    # chosen to divide k_pad so no large activation pad/copy pass is needed.
    if b_pad != B or k_pad != k_in:
        flat = jnp.pad(flat, ((0, b_pad - B), (0, k_pad - k_in)))

    grid = (b_pad // TM, k_pad // TK)

    out = pl.pallas_call(
        fused_encoder_kernel,
        out_shape=jax.ShapeDtypeStruct((b_pad, EMB_DIM), jnp.float32),
        grid_spec=pltpu.PrefetchScalarGridSpec(
            num_scalar_prefetch=0,
            grid=grid,
            in_specs=[
                pl.BlockSpec((TM, TK), lambda m, k: (m, k)),        # x (f32)
                pl.BlockSpec((TK, EMB_DIM), lambda m, k: (k, 0)),   # w_comb (bf16)
                pl.BlockSpec((1, EMB_DIM), lambda m, k: (0, 0)),    # b_head (f32)
            ],
            out_specs=pl.BlockSpec((TM, EMB_DIM), lambda m, k: (m, 0)),
        ),
        compiler_params=pltpu.CompilerParams(
            dimension_semantics=("parallel", "arbitrary"),
            # > v5e's 16 MiB default scoped VMEM (big tiles need ~21 MiB max),
            # safely under v7x's 64 MiB physical VMEM per TensorCore.
            vmem_limit_bytes=48 * 1024 * 1024),
    )(flat, w_comb, b_head)

    return out[:B]


# ----------------------------------------------------------------------------
# References.
# ----------------------------------------------------------------------------
def _reference_f32(images, raw_params):
    """Pure-f32 module math: linear CLIP stand-in, Linear, eval BatchNorm1d,
    Dropout = identity."""
    B = images.shape[0]
    flat = images.reshape(B, -1).astype(jnp.float32)
    feats = flat @ raw_params["w_clip"]
    y = feats @ raw_params["w_lin"] + raw_params["b_lin"]
    inv = raw_params["bn_gamma"] / jnp.sqrt(raw_params["bn_var"] + BN_EPS)
    return (y - raw_params["bn_mean"]) * inv + raw_params["bn_beta"]


def _reference_kernel_numerics(images, prepared):
    """Mirrors the kernel's numerics (bf16 precomposed weight, f32 acc)."""
    B = images.shape[0]
    flat = images.reshape(B, -1).astype(jnp.float32)
    k_in = flat.shape[1]
    w = prepared["w_comb"][:k_in]
    return (jnp.dot(flat.astype(jnp.bfloat16), w,
                    preferred_element_type=jnp.float32)
            + prepared["b_head"])


if __name__ == "__main__":
    key = jax.random.PRNGKey(0)
    k_img, k_clip, k_w, k_b, k_g, k_be, k_m, k_v = jax.random.split(key, 8)

    B, C, H, W = 2, 4, 16, 16                       # small NCHW input
    images = jax.random.normal(k_img, (B, C, H, W), dtype=jnp.float32)

    in_dim = C * H * W
    raw_params = {
        "w_clip":  jax.random.normal(k_clip, (in_dim, IN_FEAT),
                                     dtype=jnp.float32) * 0.02,
        "w_lin":   jax.random.normal(k_w, (IN_FEAT, EMB_DIM),
                                     dtype=jnp.float32) * 0.02,
        "b_lin":   jax.random.normal(k_b, (EMB_DIM,), dtype=jnp.float32) * 0.1,
        "bn_gamma": 1.0 + 0.1 * jax.random.normal(k_g, (EMB_DIM,),
                                                  dtype=jnp.float32),
        "bn_beta":  0.1 * jax.random.normal(k_be, (EMB_DIM,),
                                            dtype=jnp.float32),
        "bn_mean":  0.1 * jax.random.normal(k_m, (EMB_DIM,),
                                            dtype=jnp.float32),
        "bn_var":   jnp.abs(jax.random.normal(k_v, (EMB_DIM,),
                                              dtype=jnp.float32)) + 0.5,
    }

    prepared = prepare_params(raw_params)           # once, off the hot path
    fwd = jax.jit(image_encoder_clip_forward)

    out = jax.block_until_ready(fwd(images, prepared))
    assert out.shape == (B, EMB_DIM) and out.dtype == jnp.float32

    # 1) Kernel logic check against a reference with identical numerics.
    ref_mirror = _reference_kernel_numerics(images, prepared)
    err_mirror = jnp.max(jnp.abs(out - ref_mirror))
    assert jnp.allclose(out, ref_mirror, rtol=1e-3, atol=1e-3), (
        f"kernel vs bf16-mirrored reference, max abs err = {err_mirror}")

    # 2) Precision check against the true f32 module math (bf16 path drift).
    ref_f32 = _reference_f32(images, raw_params)
    err_f32 = jnp.max(jnp.abs(out - ref_f32))
    assert jnp.allclose(out, ref_f32, rtol=1e-2, atol=1e-2), (
        f"kernel vs f32 reference, max abs err = {err_f32}")

    print("KERNEL_OK")
</pallas_src>

<mosaic_0001>
module attributes {stable_mosaic.version = 11 : i64} {
  func.func @fused_encoder_kernel(%arg0: i32, %arg1: i32, %arg2: memref<16x1024xf32, #tpu.memory_space<vmem>>, %arg3: memref<1024x256xbf16, #tpu.memory_space<vmem>>, %arg4: memref<1x256xf32, #tpu.memory_space<vmem>>, %arg5: memref<16x256xf32, #tpu.memory_space<vmem>>) attributes {dimension_semantics = [#tpu.dimension_semantics<parallel>, #tpu.dimension_semantics<arbitrary>], iteration_bounds = array<i64: 1, 1>, scalar_prefetch = 0 : i64, scratch_operands = 0 : i64, tpu.core_type = #tpu.core_type<tc>, window_params = [{transform_indices = @transform_0, window_bounds = array<i64: 16, 1024>}, {transform_indices = @transform_1, window_bounds = array<i64: 1024, 256>}, {pipeline_mode = #tpu.pipeline_mode<synchronous>, transform_indices = @transform_2, window_bounds = array<i64: 1, 256>}, {transform_indices = @transform_3, window_bounds = array<i64: 16, 256>}]} {
    %c0 = arith.constant 0 : index
    %c0_0 = arith.constant 0 : index
    %0 = vector.load %arg2[%c0, %c0_0] : memref<16x1024xf32, #tpu.memory_space<vmem>>, vector<16x1024xf32>
    %1 = arith.truncf %0 : vector<16x1024xf32> to vector<16x1024xbf16>
    %c0_1 = arith.constant 0 : index
    %c0_2 = arith.constant 0 : index
    %2 = vector.load %arg3[%c0_1, %c0_2] : memref<1024x256xbf16, #tpu.memory_space<vmem>>, vector<1024x256xbf16>
    %cst = arith.constant dense<0.000000e+00> : vector<16x256xf32>
    %3 = tpu.matmul %1, %2, %cst {dimension_numbers = #tpu.dot_dimension_numbers<[1], [0], [0], [1], [0, 0, 1, 1], [], []>} : vector<16x1024xbf16>, vector<1024x256xbf16>, vector<16x256xf32> -> vector<16x256xf32>
    %c0_i32 = arith.constant 0 : i32
    %4 = arith.cmpi eq, %arg1, %c0_i32 : i32
    %5 = arith.extui %4 : i1 to i32
    %c0_i32_3 = arith.constant 0 : i32
    %6 = arith.cmpi ne, %5, %c0_i32_3 : i32
    scf.if %6 {
      %c0_6 = arith.constant 0 : index
      %c0_7 = arith.constant 0 : index
      %10 = vector.load %arg4[%c0_6, %c0_7] : memref<1x256xf32, #tpu.memory_space<vmem>>, vector<1x256xf32>
      %11 = vector.broadcast %10 : vector<1x256xf32> to vector<16x256xf32>
      %12 = arith.addf %3, %11 : vector<16x256xf32>
      %c0_8 = arith.constant 0 : index
      %c0_9 = arith.constant 0 : index
      %13 = vector.load %arg5[%c0_8, %c0_9] : memref<16x256xf32, #tpu.memory_space<vmem>>, vector<16x256xf32>
      tpu.vector_store %arg5[%c0_8, %c0_9], %12 {strides = array<i32>} : memref<16x256xf32, #tpu.memory_space<vmem>>, vector<16x256xf32>,
    } else {
    }
    %c0_i32_4 = arith.constant 0 : i32
    %7 = arith.cmpi sgt, %arg1, %c0_i32_4 : i32
    %8 = arith.extui %7 : i1 to i32
    %c0_i32_5 = arith.constant 0 : i32
    %9 = arith.cmpi ne, %8, %c0_i32_5 : i32
    scf.if %9 {
      %c0_6 = arith.constant 0 : index
      %c0_7 = arith.constant 0 : index
      %10 = vector.load %arg5[%c0_6, %c0_7] : memref<16x256xf32, #tpu.memory_space<vmem>>, vector<16x256xf32>
      %11 = arith.addf %10, %3 : vector<16x256xf32>
      %c0_8 = arith.constant 0 : index
      %c0_9 = arith.constant 0 : index
      %12 = vector.load %arg5[%c0_8, %c0_9] : memref<16x256xf32, #tpu.memory_space<vmem>>, vector<16x256xf32>
      tpu.vector_store %arg5[%c0_8, %c0_9], %11 {strides = array<i32>} : memref<16x256xf32, #tpu.memory_space<vmem>>, vector<16x256xf32>,
    } else {
    }
    return
  }
  func.func @transform_0(%arg0: i32, %arg1: i32) -> (i32, i32) {
    %c0_i32 = arith.constant 0 : i32
    return %arg0, %arg1 : i32, i32
  }
  func.func @transform_1(%arg0: i32, %arg1: i32) -> (i32, i32) {
    %c0_i32 = arith.constant 0 : i32
    %c0_i32_0 = arith.constant 0 : i32
    return %arg1, %c0_i32 : i32, i32
  }
  func.func @transform_2(%arg0: i32, %arg1: i32) -> (i32, i32) {
    %c0_i32 = arith.constant 0 : i32
    %c0_i32_0 = arith.constant 0 : i32
    %c0_i32_1 = arith.constant 0 : i32
    return %c0_i32, %c0_i32_0 : i32, i32
  }
  func.func @transform_3(%arg0: i32, %arg1: i32) -> (i32, i32) {
    %c0_i32 = arith.constant 0 : i32
    %c0_i32_0 = arith.constant 0 : i32
    return %arg0, %c0_i32 : i32, i32
  }
}

</mosaic_0001>

<llo_original>
// kernel: image_encoder_clip_forward.1
$region0: #{image_encoder_clip_forward.1}
  #allocation0 [shape = 'u32[]', space=smem, size = 0x4, offset = 0x4, fixed_abs, tag = 'smem constant byte address 0x4 - core index']
  #allocation1 [shape = 'u32[144,128]{1,0:T(1,128)}', space=vmem, size = 0x12000, scoped, tag = 'internal scratch']
  %s0 = inlined_call_operand.vmem [shape: f32[16,1024], index: 0, kind: input, shape index: {}]
  %s1 = inlined_call_operand.hbm [shape: bf16[1024,256], index: 1, kind: input, shape index: {}]
  %s2 = inlined_call_operand.vmem [shape: f32[1,256], index: 2, kind: input, shape index: {}]
  %s3 = inlined_call_operand.vmem [shape: f32[16,256], index: 3, kind: output, shape index: {}]
  %s4 = sld [smem:[#allocation0]]
  $region34: #{image_encoder_clip_forward.1} parent=0
    _
  %s6 = ssub.s32 1, %s4
  %s7 = scalar_select 0, %s6, %s4
  $region1: #{image_encoder_clip_forward.1} parent=0
    #allocation2 [shape = 'u8[524288]{0}', space=vmem, size = 0x80000, scoped, tag = 'input window, operand 1, single buffered']
    #allocation3 [shape = 's32[1]{0}', space=sflag, size = 0x4, scoped, tag = 'scoped memory for image_encoder_clip_forward.1']
    %8 = vsyncpa [#allocation3], 0
    // Predicated region
    $region2: #{image_encoder_clip_forward.1} parent=1 // pred_check
      _
    $region3: #{image_encoder_clip_forward.1} parent=1 // pred_check_branch
      %10 = sbr.rel (0) target = $region5
    $region4: #{image_encoder_clip_forward.1} parent=1 // pred_region
      _
    $region5: #{image_encoder_clip_forward.1} parent=1 // pred_fallthru
      _
    // Predicated region
    $region6: #{image_encoder_clip_forward.1} parent=1 // pred_check
      _
    $region7: #{image_encoder_clip_forward.1} parent=1 // pred_check_branch
      %12 = sbr.rel (0) target = $region9
    $region8: #{image_encoder_clip_forward.1} parent=1 // pred_region
      %s14 = ssub.s32 16384, 16384
      %15 = vsyncadd [#allocation3], %s14
      %s16 = sshll.u32 [#allocation2], 4
      %s17 = int_to_ptr.vmem [resolvable:$true] %s16
      %22 = dma.hbm_to_vmem [thread:$0]  %s1, 16384, %s17, [#allocation3], 128, 128, 8
    $region9: #{image_encoder_clip_forward.1} parent=1 // pred_fallthru
      _
    // Predicated region
    $region10: #{image_encoder_clip_forward.1} parent=1 // pred_check
      _
    $region11: #{image_encoder_clip_forward.1} parent=1 // pred_check_branch
      %24 = sbr.rel (0) target = $region13
    $region12: #{image_encoder_clip_forward.1} parent=1 // pred_region
      _
    $region13: #{image_encoder_clip_forward.1} parent=1 // pred_fallthru
      _
    // Predicated region
    $region14: #{image_encoder_clip_forward.1} parent=1 // pred_check
      _
    $region15: #{image_encoder_clip_forward.1} parent=1 // pred_check_branch
      %26 = sbr.rel (0) target = $region17
    $region16: #{image_encoder_clip_forward.1} parent=1 // pred_region
      %27 = dma.done [#allocation3], 16384
    $region17: #{image_encoder_clip_forward.1} parent=1 // pred_fallthru
      _
    %v28 = vld [vmem:[%s0] sm:$0xff]
    %v29 = vld [vmem:[%s0 + $0x8] sm:$0xff]
    %v30 = vld [vmem:[%s0 + $0x10] sm:$0xff]
    %v31 = vld [vmem:[%s0 + $0x18] sm:$0xff]
    %v32 = vld [vmem:[%s0 + $0x20] sm:$0xff]
    %v33 = vld [vmem:[%s0 + $0x28] sm:$0xff]
    %v34 = vld [vmem:[%s0 + $0x30] sm:$0xff]
    %v35 = vld [vmem:[%s0 + $0x38] sm:$0xff]
    %v36 = vld [vmem:[%s0 + $0x40] sm:$0xff]
    %v37 = vld [vmem:[%s0 + $0x48] sm:$0xff]
    %v38 = vld [vmem:[%s0 + $0x50] sm:$0xff]
    %v39 = vld [vmem:[%s0 + $0x58] sm:$0xff]
    %v40 = vld [vmem:[%s0 + $0x60] sm:$0xff]
    %v41 = vld [vmem:[%s0 + $0x68] sm:$0xff]
    %v42 = vld [vmem:[%s0 + $0x70] sm:$0xff]
    %v43 = vld [vmem:[%s0 + $0x78] sm:$0xff]
    %v44 = vpack.c.bf16 %v36, %v28
    %v45 = vpack.c.bf16 %v37, %v29
    %v46 = vpack.c.bf16 %v38, %v30
    %v47 = vpack.c.bf16 %v39, %v31
    %v48 = vpack.c.bf16 %v40, %v32
    %v49 = vpack.c.bf16 %v41, %v33
    %v50 = vpack.c.bf16 %v42, %v34
    %v51 = vpack.c.bf16 %v43, %v35
    %v52 = vld [vmem:[#allocation2] sm:$0xff]
    %v53 = vld [vmem:[#allocation2 + $0x8] sm:$0xff]
    %v54 = vld [vmem:[#allocation2 + $0x10] sm:$0xff]
    %v55 = vld [vmem:[#allocation2 + $0x18] sm:$0xff]
    %v56 = vld [vmem:[#allocation2 + $0x20] sm:$0xff]
    %v57 = vld [vmem:[#allocation2 + $0x28] sm:$0xff]
    %v58 = vld [vmem:[#allocation2 + $0x30] sm:$0xff]
    %v59 = vld [vmem:[#allocation2 + $0x38] sm:$0xff]
    %v60 = vld [vmem:[#allocation2 + $0x40] sm:$0xff]
    %v61 = vld [vmem:[#allocation2 + $0x48] sm:$0xff]
    %v62 = vld [vmem:[#allocation2 + $0x50] sm:$0xff]
    %v63 = vld [vmem:[#allocation2 + $0x58] sm:$0xff]
    %v64 = vld [vmem:[#allocation2 + $0x60] sm:$0xff]
    %v65 = vld [vmem:[#allocation2 + $0x68] sm:$0xff]
    %v66 = vld [vmem:[#allocation2 + $0x70] sm:$0xff]
    %v67 = vld [vmem:[#allocation2 + $0x78] sm:$0xff]
    %v68 = vld [vmem:[#allocation2 + $0x80] sm:$0xff]
    %v69 = vld [vmem:[#allocation2 + $0x88] sm:$0xff]
    %v70 = vld [vmem:[#allocation2 + $0x90] sm:$0xff]
    %v71 = vld [vmem:[#allocation2 + $0x98] sm:$0xff]
    %v72 = vld [vmem:[#allocation2 + $0xa0] sm:$0xff]
    %v73 = vld [vmem:[#allocation2 + $0xa8] sm:$0xff]
    %v74 = vld [vmem:[#allocation2 + $0xb0] sm:$0xff]
    %v75 = vld [vmem:[#allocation2 + $0xb8] sm:$0xff]
    %v76 = vld [vmem:[#allocation2 + $0xc0] sm:$0xff]
    %v77 = vld [vmem:[#allocation2 + $0xc8] sm:$0xff]
    %v78 = vld [vmem:[#allocation2 + $0xd0] sm:$0xff]
    %v79 = vld [vmem:[#allocation2 + $0xd8] sm:$0xff]
    %v80 = vld [vmem:[#allocation2 + $0xe0] sm:$0xff]
    %v81 = vld [vmem:[#allocation2 + $0xe8] sm:$0xff]
    %v82 = vld [vmem:[#allocation2 + $0xf0] sm:$0xff]
    %v83 = vld [vmem:[#allocation2 + $0xf8] sm:$0xff]
    %v84 = vld [vmem:[#allocation2 + $0x100] sm:$0xff]
    %v85 = vld [vmem:[#allocation2 + $0x108] sm:$0xff]
    %v86 = vld [vmem:[#allocation2 + $0x110] sm:$0xff]
    %v87 = vld [vmem:[#allocation2 + $0x118] sm:$0xff]
    %v88 = vld [vmem:[#allocation2 + $0x120] sm:$0xff]
    %v89 = vld [vmem:[#allocation2 + $0x128] sm:$0xff]
    %v90 = vld [vmem:[#allocation2 + $0x130] sm:$0xff]
    %v91 = vld [vmem:[#allocation2 + $0x138] sm:$0xff]
    %v92 = vld [vmem:[#allocation2 + $0x140] sm:$0xff]
    %v93 = vld [vmem:[#allocation2 + $0x148] sm:$0xff]
    %v94 = vld [vmem:[#allocation2 + $0x150] sm:$0xff]
    %v95 = vld [vmem:[#allocation2 + $0x158] sm:$0xff]
    %v96 = vld [vmem:[#allocation2 + $0x160] sm:$0xff]
    %v97 = vld [vmem:[#allocation2 + $0x168] sm:$0xff]
    %v98 = vld [vmem:[#allocation2 + $0x170] sm:$0xff]
    %v99 = vld [vmem:[#allocation2 + $0x178] sm:$0xff]
    %v100 = vld [vmem:[#allocation2 + $0x180] sm:$0xff]
    %v101 = vld [vmem:[#allocation2 + $0x188] sm:$0xff]
    %v102 = vld [vmem:[#allocation2 + $0x190] sm:$0xff]
    %v103 = vld [vmem:[#allocation2 + $0x198] sm:$0xff]
    %v104 = vld [vmem:[#allocation2 + $0x1a0] sm:$0xff]
    %v105 = vld [vmem:[#allocation2 + $0x1a8] sm:$0xff]
    %v106 = vld [vmem:[#allocation2 + $0x1b0] sm:$0xff]
    %v107 = vld [vmem:[#allocation2 + $0x1b8] sm:$0xff]
    %v108 = vld [vmem:[#allocation2 + $0x1c0] sm:$0xff]
    %v109 = vld [vmem:[#allocation2 + $0x1c8] sm:$0xff]
    %v110 = vld [vmem:[#allocation2 + $0x1d0] sm:$0xff]
    %v111 = vld [vmem:[#allocation2 + $0x1d8] sm:$0xff]
    %v112 = vld [vmem:[#allocation2 + $0x1e0] sm:$0xff]
    %v113 = vld [vmem:[#allocation2 + $0x1e8] sm:$0xff]
    %v114 = vld [vmem:[#allocation2 + $0x1f0] sm:$0xff]
    %v115 = vld [vmem:[#allocation2 + $0x1f8] sm:$0xff]
    %v116 = vld [vmem:[#allocation2 + $0x200] sm:$0xff]
    %v117 = vld [vmem:[#allocation2 + $0x208] sm:$0xff]
    %v118 = vld [vmem:[#allocation2 + $0x210] sm:$0xff]
    %v119 = vld [vmem:[#allocation2 + $0x218] sm:$0xff]
    %v120 = vld [vmem:[#allocation2 + $0x220] sm:$0xff]
    %v121 = vld [vmem:[#allocation2 + $0x228] sm:$0xff]
    %v122 = vld [vmem:[#allocation2 + $0x230] sm:$0xff]
    %v123 = vld [vmem:[#allocation2 + $0x238] sm:$0xff]
    %v124 = vld [vmem:[#allocation2 + $0x240] sm:$0xff]
    %v125 = vld [vmem:[#allocation2 + $0x248] sm:$0xff]
    %v126 = vld [vmem:[#allocation2 + $0x250] sm:$0xff]
    %v127 = vld [vmem:[#allocation2 + $0x258] sm:$0xff]
    %v128 = vld [vmem:[#allocation2 + $0x260] sm:$0xff]
    %v129 = vld [vmem:[#allocation2 + $0x268] sm:$0xff]
    %v130 = vld [vmem:[#allocation2 + $0x270] sm:$0xff]
    %v131 = vld [vmem:[#allocation2 + $0x278] sm:$0xff]
    %v132 = vld [vmem:[#allocation2 + $0x280] sm:$0xff]
    %v133 = vld [vmem:[#allocation2 + $0x288] sm:$0xff]
    %v134 = vld [vmem:[#allocation2 + $0x290] sm:$0xff]
    %v135 = vld [vmem:[#allocation2 + $0x298] sm:$0xff]
    %v136 = vld [vmem:[#allocation2 + $0x2a0] sm:$0xff]
    %v137 = vld [vmem:[#allocation2 + $0x2a8] sm:$0xff]
    %v138 = vld [vmem:[#allocation2 + $0x2b0] sm:$0xff]
    %v139 = vld [vmem:[#allocation2 + $0x2b8] sm:$0xff]
    %v140 = vld [vmem:[#allocation2 + $0x2c0] sm:$0xff]
    %v141 = vld [vmem:[#allocation2 + $0x2c8] sm:$0xff]
    %v142 = vld [vmem:[#allocation2 + $0x2d0] sm:$0xff]
    %v143 = vld [vmem:[#allocation2 + $0x2d8] sm:$0xff]
    %v144 = vld [vmem:[#allocation2 + $0x2e0] sm:$0xff]
    %v145 = vld [vmem:[#allocation2 + $0x2e8] sm:$0xff]
    %v146 = vld [vmem:[#allocation2 + $0x2f0] sm:$0xff]
    %v147 = vld [vmem:[#allocation2 + $0x2f8] sm:$0xff]
    %v148 = vld [vmem:[#allocation2 + $0x300] sm:$0xff]
    %v149 = vld [vmem:[#allocation2 + $0x308] sm:$0xff]
    %v150 = vld [vmem:[#allocation2 + $0x310] sm:$0xff]
    %v151 = vld [vmem:[#allocation2 + $0x318] sm:$0xff]
    %v152 = vld [vmem:[#allocation2 + $0x320] sm:$0xff]
    %v153 = vld [vmem:[#allocation2 + $0x328] sm:$0xff]
    %v154 = vld [vmem:[#allocation2 + $0x330] sm:$0xff]
    %v155 = vld [vmem:[#allocation2 + $0x338] sm:$0xff]
    %v156 = vld [vmem:[#allocation2 + $0x340] sm:$0xff]
    %v157 = vld [vmem:[#allocation2 + $0x348] sm:$0xff]
    %v158 = vld [vmem:[#allocation2 + $0x350] sm:$0xff]
    %v159 = vld [vmem:[#allocation2 + $0x358] sm:$0xff]
    %v160 = vld [vmem:[#allocation2 + $0x360] sm:$0xff]
    %v161 = vld [vmem:[#allocation2 + $0x368] sm:$0xff]
    %v162 = vld [vmem:[#allocation2 + $0x370] sm:$0xff]
    %v163 = vld [vmem:[#allocation2 + $0x378] sm:$0xff]
    %v164 = vld [vmem:[#allocation2 + $0x380] sm:$0xff]
    %v165 = vld [vmem:[#allocation2 + $0x388] sm:$0xff]
    %v166 = vld [vmem:[#allocation2 + $0x390] sm:$0xff]
    %v167 = vld [vmem:[#allocation2 + $0x398] sm:$0xff]
    %v168 = vld [vmem:[#allocation2 + $0x3a0] sm:$0xff]
    %v169 = vld [vmem:[#allocation2 + $0x3a8] sm:$0xff]
    %v170 = vld [vmem:[#allocation2 + $0x3b0] sm:$0xff]
    %v171 = vld [vmem:[#allocation2 + $0x3b8] sm:$0xff]
    %v172 = vld [vmem:[#allocation2 + $0x3c0] sm:$0xff]
    %v173 = vld [vmem:[#allocation2 + $0x3c8] sm:$0xff]
    %v174 = vld [vmem:[#allocation2 + $0x3d0] sm:$0xff]
    %v175 = vld [vmem:[#allocation2 + $0x3d8] sm:$0xff]
    %v176 = vld [vmem:[#allocation2 + $0x3e0] sm:$0xff]
    %v177 = vld [vmem:[#allocation2 + $0x3e8] sm:$0xff]
    %v178 = vld [vmem:[#allocation2 + $0x3f0] sm:$0xff]
    %v179 = vld [vmem:[#allocation2 + $0x3f8] sm:$0xff]
    %v308 = vunpack.c.l.b16 %v52
    %v309 = vunpack.c.h.b16 %v52
    %v310 = vunpack.c.l.b16 %v53
    %v311 = vunpack.c.h.b16 %v53
    %v312 = vunpack.c.l.b16 %v54
    %v313 = vunpack.c.h.b16 %v54
    %v314 = vunpack.c.l.b16 %v55
    %v315 = vunpack.c.h.b16 %v55
    %v316 = vunpack.c.l.b16 %v56
    %v317 = vunpack.c.h.b16 %v56
    %v318 = vunpack.c.l.b16 %v57
    %v319 = vunpack.c.h.b16 %v57
    %v320 = vunpack.c.l.b16 %v58
    %v321 = vunpack.c.h.b16 %v58
    %v322 = vunpack.c.l.b16 %v59
    %v323 = vunpack.c.h.b16 %v59
    %v324 = vunpack.c.l.b16 %v60
    %v325 = vunpack.c.h.b16 %v60
    %v326 = vunpack.c.l.b16 %v61
    %v327 = vunpack.c.h.b16 %v61
    %v328 = vunpack.c.l.b16 %v62
    %v329 = vunpack.c.h.b16 %v62
    %v330 = vunpack.c.l.b16 %v63
    %v331 = vunpack.c.h.b16 %v63
    %v332 = vunpack.c.l.b16 %v64
    %v333 = vunpack.c.h.b16 %v64
    %v334 = vunpack.c.l.b16 %v65
    %v335 = vunpack.c.h.b16 %v65
    %v336 = vunpack.c.l.b16 %v66
    %v337 = vunpack.c.h.b16 %v66
    %v338 = vunpack.c.l.b16 %v67
    %v339 = vunpack.c.h.b16 %v67
    %v340 = vunpack.c.l.b16 %v68
    %v341 = vunpack.c.h.b16 %v68
    %v342 = vunpack.c.l.b16 %v69
    %v343 = vunpack.c.h.b16 %v69
    %v344 = vunpack.c.l.b16 %v70
    %v345 = vunpack.c.h.b16 %v70
    %v346 = vunpack.c.l.b16 %v71
    %v347 = vunpack.c.h.b16 %v71
    %v348 = vunpack.c.l.b16 %v72
    %v349 = vunpack.c.h.b16 %v72
    %v350 = vunpack.c.l.b16 %v73
    %v351 = vunpack.c.h.b16 %v73
    %v352 = vunpack.c.l.b16 %v74
    %v353 = vunpack.c.h.b16 %v74
    %v354 = vunpack.c.l.b16 %v75
    %v355 = vunpack.c.h.b16 %v75
    %v356 = vunpack.c.l.b16 %v76
    %v357 = vunpack.c.h.b16 %v76
    %v358 = vunpack.c.l.b16 %v77
    %v359 = vunpack.c.h.b16 %v77
    %v360 = vunpack.c.l.b16 %v78
    %v361 = vunpack.c.h.b16 %v78
    %v362 = vunpack.c.l.b16 %v79
    %v363 = vunpack.c.h.b16 %v79
    %v364 = vunpack.c.l.b16 %v80
    %v365 = vunpack.c.h.b16 %v80
    %v366 = vunpack.c.l.b16 %v81
    %v367 = vunpack.c.h.b16 %v81
    %v368 = vunpack.c.l.b16 %v82
    %v369 = vunpack.c.h.b16 %v82
    %v370 = vunpack.c.l.b16 %v83
    %v371 = vunpack.c.h.b16 %v83
    %v372 = vunpack.c.l.b16 %v84
    %v373 = vunpack.c.h.b16 %v84
    %v374 = vunpack.c.l.b16 %v85
    %v375 = vunpack.c.h.b16 %v85
    %v376 = vunpack.c.l.b16 %v86
    %v377 = vunpack.c.h.b16 %v86
    %v378 = vunpack.c.l.b16 %v87
    %v379 = vunpack.c.h.b16 %v87
    %v380 = vunpack.c.l.b16 %v88
    %v381 = vunpack.c.h.b16 %v88
    %v382 = vunpack.c.l.b16 %v89
    %v383 = vunpack.c.h.b16 %v89
    %v384 = vunpack.c.l.b16 %v90
    %v385 = vunpack.c.h.b16 %v90
    %v386 = vunpack.c.l.b16 %v91
    %v387 = vunpack.c.h.b16 %v91
    %v388 = vunpack.c.l.b16 %v92
    %v389 = vunpack.c.h.b16 %v92
    %v390 = vunpack.c.l.b16 %v93
    %v391 = vunpack.c.h.b16 %v93
    %v392 = vunpack.c.l.b16 %v94
    %v393 = vunpack.c.h.b16 %v94
    %v394 = vunpack.c.l.b16 %v95
    %v395 = vunpack.c.h.b16 %v95
    %v396 = vunpack.c.l.b16 %v96
    %v397 = vunpack.c.h.b16 %v96
    %v398 = vunpack.c.l.b16 %v97
    %v399 = vunpack.c.h.b16 %v97
    %v400 = vunpack.c.l.b16 %v98
    %v401 = vunpack.c.h.b16 %v98
    %v402 = vunpack.c.l.b16 %v99
    %v403 = vunpack.c.h.b16 %v99
    %v404 = vunpack.c.l.b16 %v100
    %v405 = vunpack.c.h.b16 %v100
    %v406 = vunpack.c.l.b16 %v101
    %v407 = vunpack.c.h.b16 %v101
    %v408 = vunpack.c.l.b16 %v102
    %v409 = vunpack.c.h.b16 %v102
    %v410 = vunpack.c.l.b16 %v103
    %v411 = vunpack.c.h.b16 %v103
    %v412 = vunpack.c.l.b16 %v104
    %v413 = vunpack.c.h.b16 %v104
    %v414 = vunpack.c.l.b16 %v105
    %v415 = vunpack.c.h.b16 %v105
    %v416 = vunpack.c.l.b16 %v106
    %v417 = vunpack.c.h.b16 %v106
    %v418 = vunpack.c.l.b16 %v107
    %v419 = vunpack.c.h.b16 %v107
    %v420 = vunpack.c.l.b16 %v108
    %v421 = vunpack.c.h.b16 %v108
    %v422 = vunpack.c.l.b16 %v109
    %v423 = vunpack.c.h.b16 %v109
    %v424 = vunpack.c.l.b16 %v110
    %v425 = vunpack.c.h.b16 %v110
    %v426 = vunpack.c.l.b16 %v111
    %v427 = vunpack.c.h.b16 %v111
    %v428 = vunpack.c.l.b16 %v112
    %v429 = vunpack.c.h.b16 %v112
    %v430 = vunpack.c.l.b16 %v113
    %v431 = vunpack.c.h.b16 %v113
    %v432 = vunpack.c.l.b16 %v114
    %v433 = vunpack.c.h.b16 %v114
    %v434 = vunpack.c.l.b16 %v115
    %v435 = vunpack.c.h.b16 %v115
    %v436 = vunpack.c.l.b16 %v116
    %v437 = vunpack.c.h.b16 %v116
    %v438 = vunpack.c.l.b16 %v117
    %v439 = vunpack.c.h.b16 %v117
    %v440 = vunpack.c.l.b16 %v118
    %v441 = vunpack.c.h.b16 %v118
    %v442 = vunpack.c.l.b16 %v119
    %v443 = vunpack.c.h.b16 %v119
    %v444 = vunpack.c.l.b16 %v120
    %v445 = vunpack.c.h.b16 %v120
    %v446 = vunpack.c.l.b16 %v121
    %v447 = vunpack.c.h.b16 %v121
    %v448 = vunpack.c.l.b16 %v122
    %v449 = vunpack.c.h.b16 %v122
    %v450 = vunpack.c.l.b16 %v123
    %v451 = vunpack.c.h.b16 %v123
    %v452 = vunpack.c.l.b16 %v124
    %v453 = vunpack.c.h.b16 %v124
    %v454 = vunpack.c.l.b16 %v125
    %v455 = vunpack.c.h.b16 %v125
    %v456 = vunpack.c.l.b16 %v126
    %v457 = vunpack.c.h.b16 %v126
    %v458 = vunpack.c.l.b16 %v127
    %v459 = vunpack.c.h.b16 %v127
    %v460 = vunpack.c.l.b16 %v128
    %v461 = vunpack.c.h.b16 %v128
    %v462 = vunpack.c.l.b16 %v129
    %v463 = vunpack.c.h.b16 %v129
    %v464 = vunpack.c.l.b16 %v130
    %v465 = vunpack.c.h.b16 %v130
    %v466 = vunpack.c.l.b16 %v131
    %v467 = vunpack.c.h.b16 %v131
    %v468 = vunpack.c.l.b16 %v132
    %v469 = vunpack.c.h.b16 %v132
    %v470 = vunpack.c.l.b16 %v133
    %v471 = vunpack.c.h.b16 %v133
    %v472 = vunpack.c.l.b16 %v134
    %v473 = vunpack.c.h.b16 %v134
    %v474 = vunpack.c.l.b16 %v135
    %v475 = vunpack.c.h.b16 %v135
    %v476 = vunpack.c.l.b16 %v136
    %v477 = vunpack.c.h.b16 %v136
    %v478 = vunpack.c.l.b16 %v137
    %v479 = vunpack.c.h.b16 %v137
    %v480 = vunpack.c.l.b16 %v138
    %v481 = vunpack.c.h.b16 %v138
    %v482 = vunpack.c.l.b16 %v139
    %v483 = vunpack.c.h.b16 %v139
    %v484 = vunpack.c.l.b16 %v140
    %v485 = vunpack.c.h.b16 %v140
    %v486 = vunpack.c.l.b16 %v141
    %v487 = vunpack.c.h.b16 %v141
    %v488 = vunpack.c.l.b16 %v142
    %v489 = vunpack.c.h.b16 %v142
    %v490 = vunpack.c.l.b16 %v143
    %v491 = vunpack.c.h.b16 %v143
    %v492 = vunpack.c.l.b16 %v144
    %v493 = vunpack.c.h.b16 %v144
    %v494 = vunpack.c.l.b16 %v145
    %v495 = vunpack.c.h.b16 %v145
    %v496 = vunpack.c.l.b16 %v146
    %v497 = vunpack.c.h.b16 %v146
    %v498 = vunpack.c.l.b16 %v147
    %v499 = vunpack.c.h.b16 %v147
    %v500 = vunpack.c.l.b16 %v148
    %v501 = vunpack.c.h.b16 %v148
    %v502 = vunpack.c.l.b16 %v149
    %v503 = vunpack.c.h.b16 %v149
    %v504 = vunpack.c.l.b16 %v150
    %v505 = vunpack.c.h.b16 %v150
    %v506 = vunpack.c.l.b16 %v151
    %v507 = vunpack.c.h.b16 %v151
    %v508 = vunpack.c.l.b16 %v152
    %v509 = vunpack.c.h.b16 %v152
    %v510 = vunpack.c.l.b16 %v153
    %v511 = vunpack.c.h.b16 %v153
    %v512 = vunpack.c.l.b16 %v154
    %v513 = vunpack.c.h.b16 %v154
    %v514 = vunpack.c.l.b16 %v155
    %v515 = vunpack.c.h.b16 %v155
    %v516 = vunpack.c.l.b16 %v156
    %v517 = vunpack.c.h.b16 %v156
    %v518 = vunpack.c.l.b16 %v157
    %v519 = vunpack.c.h.b16 %v157
    %v520 = vunpack.c.l.b16 %v158
    %v521 = vunpack.c.h.b16 %v158
    %v522 = vunpack.c.l.b16 %v159
    %v523 = vunpack.c.h.b16 %v159
    %v524 = vunpack.c.l.b16 %v160
    %v525 = vunpack.c.h.b16 %v160
    %v526 = vunpack.c.l.b16 %v161
    %v527 = vunpack.c.h.b16 %v161
    %v528 = vunpack.c.l.b16 %v162
    %v529 = vunpack.c.h.b16 %v162
    %v530 = vunpack.c.l.b16 %v163
    %v531 = vunpack.c.h.b16 %v163
    %v532 = vunpack.c.l.b16 %v164
    %v533 = vunpack.c.h.b16 %v164
    %v534 = vunpack.c.l.b16 %v165
    %v535 = vunpack.c.h.b16 %v165
    %v536 = vunpack.c.l.b16 %v166
    %v537 = vunpack.c.h.b16 %v166
    %v538 = vunpack.c.l.b16 %v167
    %v539 = vunpack.c.h.b16 %v167
    %v540 = vunpack.c.l.b16 %v168
    %v541 = vunpack.c.h.b16 %v168
    %v542 = vunpack.c.l.b16 %v169
    %v543 = vunpack.c.h.b16 %v169
    %v544 = vunpack.c.l.b16 %v170
    %v545 = vunpack.c.h.b16 %v170
    %v546 = vunpack.c.l.b16 %v171
    %v547 = vunpack.c.h.b16 %v171
    %v548 = vunpack.c.l.b16 %v172
    %v549 = vunpack.c.h.b16 %v172
    %v550 = vunpack.c.l.b16 %v173
    %v551 = vunpack.c.h.b16 %v173
    %v552 = vunpack.c.l.b16 %v174
    %v553 = vunpack.c.h.b16 %v174
    %v554 = vunpack.c.l.b16 %v175
    %v555 = vunpack.c.h.b16 %v175
    %v556 = vunpack.c.l.b16 %v176
    %v557 = vunpack.c.h.b16 %v176
    %v558 = vunpack.c.l.b16 %v177
    %v559 = vunpack.c.h.b16 %v177
    %v560 = vunpack.c.l.b16 %v178
    %v561 = vunpack.c.h.b16 %v178
    %v562 = vunpack.c.l.b16 %v179
    %v563 = vunpack.c.h.b16 %v179
    %v564 = vpack.c.b16 %v310, %v308
    %v565 = vpack.c.b16 %v311, %v309
    %v566 = vpack.c.b16 %v314, %v312
    %v567 = vpack.c.b16 %v315, %v313
    %v568 = vpack.c.b16 %v318, %v316
    %v569 = vpack.c.b16 %v319, %v317
    %v570 = vpack.c.b16 %v322, %v320
    %v571 = vpack.c.b16 %v323, %v321
    %v572 = vpack.c.b16 %v326, %v324
    %v573 = vpack.c.b16 %v327, %v325
    %v574 = vpack.c.b16 %v330, %v328
    %v575 = vpack.c.b16 %v331, %v329
    %v576 = vpack.c.b16 %v334, %v332
    %v577 = vpack.c.b16 %v335, %v333
    %v578 = vpack.c.b16 %v338, %v336
    %v579 = vpack.c.b16 %v339, %v337
    %v580 = vpack.c.b16 %v342, %v340
    %v581 = vpack.c.b16 %v343, %v341
    %v582 = vpack.c.b16 %v346, %v344
    %v583 = vpack.c.b16 %v347, %v345
    %v584 = vpack.c.b16 %v350, %v348
    %v585 = vpack.c.b16 %v351, %v349
    %v586 = vpack.c.b16 %v354, %v352
    %v587 = vpack.c.b16 %v355, %v353
    %v588 = vpack.c.b16 %v358, %v356
    %v589 = vpack.c.b16 %v359, %v357
    %v590 = vpack.c.b16 %v362, %v360
    %v591 = vpack.c.b16 %v363, %v361
    %v592 = vpack.c.b16 %v366, %v364
    %v593 = vpack.c.b16 %v367, %v365
    %v594 = vpack.c.b16 %v370, %v368
    %v595 = vpack.c.b16 %v371, %v369
    %v596 = vpack.c.b16 %v374, %v372
    %v597 = vpack.c.b16 %v375, %v373
    %v598 = vpack.c.b16 %v378, %v376
    %v599 = vpack.c.b16 %v379, %v377
    %v600 = vpack.c.b16 %v382, %v380
    %v601 = vpack.c.b16 %v383, %v381
    %v602 = vpack.c.b16 %v386, %v384
    %v603 = vpack.c.b16 %v387, %v385
    %v604 = vpack.c.b16 %v390, %v388
    %v605 = vpack.c.b16 %v391, %v389
    %v606 = vpack.c.b16 %v394, %v392
    %v607 = vpack.c.b16 %v395, %v393
    %v608 = vpack.c.b16 %v398, %v396
    %v609 = vpack.c.b16 %v399, %v397
    %v610 = vpack.c.b16 %v402, %v400
    %v611 = vpack.c.b16 %v403, %v401
    %v612 = vpack.c.b16 %v406, %v404
    %v613 = vpack.c.b16 %v407, %v405
    %v614 = vpack.c.b16 %v410, %v408
    %v615 = vpack.c.b16 %v411, %v409
    %v616 = vpack.c.b16 %v414, %v412
    %v617 = vpack.c.b16 %v415, %v413
    %v618 = vpack.c.b16 %v418, %v416
    %v619 = vpack.c.b16 %v419, %v417
    %v620 = vpack.c.b16 %v422, %v420
    %v621 = vpack.c.b16 %v423, %v421
    %v622 = vpack.c.b16 %v426, %v424
    %v623 = vpack.c.b16 %v427, %v425
    %v624 = vpack.c.b16 %v430, %v428
    %v625 = vpack.c.b16 %v431, %v429
    %v626 = vpack.c.b16 %v434, %v432
    %v627 = vpack.c.b16 %v435, %v433
    %v628 = vpack.c.b16 %v438, %v436
    %v629 = vpack.c.b16 %v439, %v437
    %v630 = vpack.c.b16 %v442, %v440
    %v631 = vpack.c.b16 %v443, %v441
    %v632 = vpack.c.b16 %v446, %v444
    %v633 = vpack.c.b16 %v447, %v445
    %v634 = vpack.c.b16 %v450, %v448
    %v635 = vpack.c.b16 %v451, %v449
    %v636 = vpack.c.b16 %v454, %v452
    %v637 = vpack.c.b16 %v455, %v453
    %v638 = vpack.c.b16 %v458, %v456
    %v639 = vpack.c.b16 %v459, %v457
    %v640 = vpack.c.b16 %v462, %v460
    %v641 = vpack.c.b16 %v463, %v461
    %v642 = vpack.c.b16 %v466, %v464
    %v643 = vpack.c.b16 %v467, %v465
    %v644 = vpack.c.b16 %v470, %v468
    %v645 = vpack.c.b16 %v471, %v469
    %v646 = vpack.c.b16 %v474, %v472
    %v647 = vpack.c.b16 %v475, %v473
    %v648 = vpack.c.b16 %v478, %v476
    %v649 = vpack.c.b16 %v479, %v477
    %v650 = vpack.c.b16 %v482, %v480
    %v651 = vpack.c.b16 %v483, %v481
    %v652 = vpack.c.b16 %v486, %v484
    %v653 = vpack.c.b16 %v487, %v485
    %v654 = vpack.c.b16 %v490, %v488
    %v655 = vpack.c.b16 %v491, %v489
    %v656 = vpack.c.b16 %v494, %v492
    %v657 = vpack.c.b16 %v495, %v493
    %v658 = vpack.c.b16 %v498, %v496
    %v659 = vpack.c.b16 %v499, %v497
    %v660 = vpack.c.b16 %v502, %v500
    %v661 = vpack.c.b16 %v503, %v501
    %v662 = vpack.c.b16 %v506, %v504
    %v663 = vpack.c.b16 %v507, %v505
    %v664 = vpack.c.b16 %v510, %v508
    %v665 = vpack.c.b16 %v511, %v509
    %v666 = vpack.c.b16 %v514, %v512
    %v667 = vpack.c.b16 %v515, %v513
    %v668 = vpack.c.b16 %v518, %v516
    %v669 = vpack.c.b16 %v519, %v517
    %v670 = vpack.c.b16 %v522, %v520
    %v671 = vpack.c.b16 %v523, %v521
    %v672 = vpack.c.b16 %v526, %v524
    %v673 = vpack.c.b16 %v527, %v525
    %v674 = vpack.c.b16 %v530, %v528
    %v675 = vpack.c.b16 %v531, %v529
    %v676 = vpack.c.b16 %v534, %v532
    %v677 = vpack.c.b16 %v535, %v533
    %v678 = vpack.c.b16 %v538, %v536
    %v679 = vpack.c.b16 %v539, %v537
    %v680 = vpack.c.b16 %v542, %v540
    %v681 = vpack.c.b16 %v543, %v541
    %v682 = vpack.c.b16 %v546, %v544
    %v683 = vpack.c.b16 %v547, %v545
    %v684 = vpack.c.b16 %v550, %v548
    %v685 = vpack.c.b16 %v551, %v549
    %v686 = vpack.c.b16 %v554, %v552
    %v687 = vpack.c.b16 %v555, %v553
    %v688 = vpack.c.b16 %v558, %v556
    %v689 = vpack.c.b16 %v559, %v557
    %v690 = vpack.c.b16 %v562, %v560
    %v691 = vpack.c.b16 %v563, %v561
    %820 = vmatprep.subr.bf16.mxu0 %v565
    %821 = vmatpush1.bf16.msra.mxu0 %v564
    %822 = vmatprep.subr.bf16.mxu0 %v567
    %823 = vmatpush1.bf16.msra.mxu0 %v566
    %824 = vmatprep.subr.bf16.mxu0 %v569
    %825 = vmatpush1.bf16.msra.mxu0 %v568
    %826 = vmatprep.subr.bf16.mxu0 %v571
    %827 = vmatpush1.bf16.msra.mxu0 %v570
    %828 = vmatprep.subr.bf16.mxu0 %v573
    %829 = vmatpush1.bf16.msra.mxu0 %v572
    %830 = vmatprep.subr.bf16.mxu0 %v575
    %831 = vmatpush1.bf16.msra.mxu0 %v574
    %832 = vmatprep.subr.bf16.mxu0 %v577
    %833 = vmatpush1.bf16.msra.mxu0 %v576
    %834 = vmatprep.subr.bf16.mxu0 %v579
    %835 = vmatpush1.bf16.msra.mxu0 %v578
    %836 = vmatprep.subr.bf16.mxu0 %v581
    %837 = vmatpush1.bf16.msra.mxu0 %v580
    %838 = vmatprep.subr.bf16.mxu0 %v583
    %839 = vmatpush1.bf16.msra.mxu0 %v582
    %840 = vmatprep.subr.bf16.mxu0 %v585
    %841 = vmatpush1.bf16.msra.mxu0 %v584
    %842 = vmatprep.subr.bf16.mxu0 %v587
    %843 = vmatpush1.bf16.msra.mxu0 %v586
    %844 = vmatprep.subr.bf16.mxu0 %v589
    %845 = vmatpush1.bf16.msra.mxu0 %v588
    %846 = vmatprep.subr.bf16.mxu0 %v591
    %847 = vmatpush1.bf16.msra.mxu0 %v590
    %848 = vmatprep.subr.bf16.mxu0 %v593
    %849 = vmatpush1.bf16.msra.mxu0 %v592
    %850 = vmatprep.subr.bf16.mxu0 %v595
    %851 = vmatpush1.bf16.msra.mxu0 %v594
    %852 = vmatprep.mubr.bf16.mxu0 %v45
    %853 = vmatmul.mubr.bf16.gmra.mrb[0].mxu0 %v44
    %v854 = vpop.f32.mrb[0].mxu0
    %v855 = vadd.f32 0.0, %v854
    %v856 = vpop.f32.mrb[0].mxu0
    %v857 = vadd.f32 0.0, %v856
    %v858 = vpop.f32.mrb[0].mxu0
    %v859 = vadd.f32 0.0, %v858
    %v860 = vpop.f32.mrb[0].mxu0
    %v861 = vadd.f32 0.0, %v860
    %862 = vdwg.mxu0
    %863 = vmatprep.subr.bf16.mxu0 %v597
    %864 = vmatpush1.bf16.msra.mxu0 %v596
    %865 = vmatprep.subr.bf16.mxu0 %v599
    %866 = vmatpush1.bf16.msra.mxu0 %v598
    %867 = vmatprep.subr.bf16.mxu0 %v601
    %868 = vmatpush1.bf16.msra.mxu0 %v600
    %869 = vmatprep.subr.bf16.mxu0 %v603
    %870 = vmatpush1.bf16.msra.mxu0 %v602
    %871 = vmatprep.subr.bf16.mxu0 %v605
    %872 = vmatpush1.bf16.msra.mxu0 %v604
    %873 = vmatprep.subr.bf16.mxu0 %v607
    %874 = vmatpush1.bf16.msra.mxu0 %v606
    %875 = vmatprep.subr.bf16.mxu0 %v609
    %876 = vmatpush1.bf16.msra.mxu0 %v608
    %877 = vmatprep.subr.bf16.mxu0 %v611
    %878 = vmatpush1.bf16.msra.mxu0 %v610
    %879 = vmatprep.subr.bf16.mxu0 %v613
    %880 = vmatpush1.bf16.msra.mxu0 %v612
    %881 = vmatprep.subr.bf16.mxu0 %v615
    %882 = vmatpush1.bf16.msra.mxu0 %v614
    %883 = vmatprep.subr.bf16.mxu0 %v617
    %884 = vmatpush1.bf16.msra.mxu0 %v616
    %885 = vmatprep.subr.bf16.mxu0 %v619
    %886 = vmatpush1.bf16.msra.mxu0 %v618
    %887 = vmatprep.subr.bf16.mxu0 %v621
    %888 = vmatpush1.bf16.msra.mxu0 %v620
    %889 = vmatprep.subr.bf16.mxu0 %v623
    %890 = vmatpush1.bf16.msra.mxu0 %v622
    %891 = vmatprep.subr.bf16.mxu0 %v625
    %892 = vmatpush1.bf16.msra.mxu0 %v624
    %893 = vmatprep.subr.bf16.mxu0 %v627
    %894 = vmatpush1.bf16.msra.mxu0 %v626
    %895 = vmatprep.mubr.bf16.mxu0 %v47
    %896 = vmatmul.mubr.bf16.gmra.mrb[0].mxu0 %v46
    %v897 = vpop.f32.mrb[0].mxu0
    %v898 = vadd.f32 %v855, %v897
    %v899 = vpop.f32.mrb[0].mxu0
    %v900 = vadd.f32 %v857, %v899
    %v901 = vpop.f32.mrb[0].mxu0
    %v902 = vadd.f32 %v859, %v901
    %v903 = vpop.f32.mrb[0].mxu0
    %v904 = vadd.f32 %v861, %v903
    %905 = vdwg.mxu0
    %906 = vmatprep.subr.bf16.mxu0 %v629
    %907 = vmatpush1.bf16.msra.mxu0 %v628
    %908 = vmatprep.subr.bf16.mxu0 %v631
    %909 = vmatpush1.bf16.msra.mxu0 %v630
    %910 = vmatprep.subr.bf16.mxu0 %v633
    %911 = vmatpush1.bf16.msra.mxu0 %v632
    %912 = vmatprep.subr.bf16.mxu0 %v635
    %913 = vmatpush1.bf16.msra.mxu0 %v634
    %914 = vmatprep.subr.bf16.mxu0 %v637
    %915 = vmatpush1.bf16.msra.mxu0 %v636
    %916 = vmatprep.subr.bf16.mxu0 %v639
    %917 = vmatpush1.bf16.msra.mxu0 %v638
    %918 = vmatprep.subr.bf16.mxu0 %v641
    %919 = vmatpush1.bf16.msra.mxu0 %v640
    %920 = vmatprep.subr.bf16.mxu0 %v643
    %921 = vmatpush1.bf16.msra.mxu0 %v642
    %922 = vmatprep.subr.bf16.mxu0 %v645
    %923 = vmatpush1.bf16.msra.mxu0 %v644
    %924 = vmatprep.subr.bf16.mxu0 %v647
    %925 = vmatpush1.bf16.msra.mxu0 %v646
    %926 = vmatprep.subr.bf16.mxu0 %v649
    %927 = vmatpush1.bf16.msra.mxu0 %v648
    %928 = vmatprep.subr.bf16.mxu0 %v651
    %929 = vmatpush1.bf16.msra.mxu0 %v650
    %930 = vmatprep.subr.bf16.mxu0 %v653
    %931 = vmatpush1.bf16.msra.mxu0 %v652
    %932 = vmatprep.subr.bf16.mxu0 %v655
    %933 = vmatpush1.bf16.msra.mxu0 %v654
    %934 = vmatprep.subr.bf16.mxu0 %v657
    %935 = vmatpush1.bf16.msra.mxu0 %v656
    %936 = vmatprep.subr.bf16.mxu0 %v659
    %937 = vmatpush1.bf16.msra.mxu0 %v658
    %938 = vmatprep.mubr.bf16.mxu0 %v49
    %939 = vmatmul.mubr.bf16.gmra.mrb[0].mxu0 %v48
    %v940 = vpop.f32.mrb[0].mxu0
    %v941 = vadd.f32 %v898, %v940
    %v942 = vpop.f32.mrb[0].mxu0
    %v943 = vadd.f32 %v900, %v942
    %v944 = vpop.f32.mrb[0].mxu0
    %v945 = vadd.f32 %v902, %v944
    %v946 = vpop.f32.mrb[0].mxu0
    %v947 = vadd.f32 %v904, %v946
    %948 = vdwg.mxu0
    %949 = vmatprep.subr.bf16.mxu0 %v661
    %950 = vmatpush1.bf16.msra.mxu0 %v660
    %951 = vmatprep.subr.bf16.mxu0 %v663
    %952 = vmatpush1.bf16.msra.mxu0 %v662
    %953 = vmatprep.subr.bf16.mxu0 %v665
    %954 = vmatpush1.bf16.msra.mxu0 %v664
    %955 = vmatprep.subr.bf16.mxu0 %v667
    %956 = vmatpush1.bf16.msra.mxu0 %v666
    %957 = vmatprep.subr.bf16.mxu0 %v669
    %958 = vmatpush1.bf16.msra.mxu0 %v668
    %959 = vmatprep.subr.bf16.mxu0 %v671
    %960 = vmatpush1.bf16.msra.mxu0 %v670
    %961 = vmatprep.subr.bf16.mxu0 %v673
    %962 = vmatpush1.bf16.msra.mxu0 %v672
    %963 = vmatprep.subr.bf16.mxu0 %v675
    %964 = vmatpush1.bf16.msra.mxu0 %v674
    %965 = vmatprep.subr.bf16.mxu0 %v677
    %966 = vmatpush1.bf16.msra.mxu0 %v676
    %967 = vmatprep.subr.bf16.mxu0 %v679
    %968 = vmatpush1.bf16.msra.mxu0 %v678
    %969 = vmatprep.subr.bf16.mxu0 %v681
    %970 = vmatpush1.bf16.msra.mxu0 %v680
    %971 = vmatprep.subr.bf16.mxu0 %v683
    %972 = vmatpush1.bf16.msra.mxu0 %v682
    %973 = vmatprep.subr.bf16.mxu0 %v685
    %974 = vmatpush1.bf16.msra.mxu0 %v684
    %975 = vmatprep.subr.bf16.mxu0 %v687
    %976 = vmatpush1.bf16.msra.mxu0 %v686
    %977 = vmatprep.subr.bf16.mxu0 %v689
    %978 = vmatpush1.bf16.msra.mxu0 %v688
    %979 = vmatprep.subr.bf16.mxu0 %v691
    %980 = vmatpush1.bf16.msra.mxu0 %v690
    %981 = vmatprep.mubr.bf16.mxu0 %v51
    %982 = vmatmul.mubr.bf16.gmra.mrb[0].mxu0 %v50
    %v983 = vpop.f32.mrb[0].mxu0
    %v984 = vadd.f32 %v941, %v983
    %v985 = vpop.f32.mrb[0].mxu0
    %v986 = vadd.f32 %v943, %v985
    %v987 = vpop.f32.mrb[0].mxu0
    %v988 = vadd.f32 %v945, %v987
    %v989 = vpop.f32.mrb[0].mxu0
    %v990 = vadd.f32 %v947, %v989
    %991 = vdwg.mxu0
    %p992 = scmp.eq.s32.totalorder 0, 0
    // Predicated region
    $region18: #{image_encoder_clip_forward.1} parent=1 // pred_check
      %p993 = pneg %p992
    $region19: #{image_encoder_clip_forward.1} parent=1 // pred_check_branch
      %995 = sbr.rel (%p993) target = $region21
    $region20: #{image_encoder_clip_forward.1} parent=1 // pred_region
      %v996 = vld [vmem:[%s2] sm:$0x3]
      %v998 = vlaneseq
      %v999 = vshrl.u32 %v998, 7
      %v1000 = vsub.s32 0, %v999
      %v1001 = vrot.slane %v996, %v1000
      %v1002 = vlaneseq
      %v1003 = vshrl.u32 %v1002, 7
      %v1004 = vsub.s32 1, %v1003
      %v1005 = vrot.slane %v996, %v1004
      %v1008 = vadd.f32 %v984, %v1001
      %v1009 = vadd.f32 %v986, %v1005
      %v1010 = vadd.f32 %v988, %v1001
      %v1011 = vadd.f32 %v990, %v1005
      %1012 = vst [vmem:[%s3] sm:$0xff] %v1008
      %1013 = vst [vmem:[%s3 + $0x8] sm:$0xff] %v1009
      %1014 = vst [vmem:[%s3 + $0x10] sm:$0xff] %v1010
      %1015 = vst [vmem:[%s3 + $0x18] sm:$0xff] %v1011
    $region21: #{image_encoder_clip_forward.1} parent=1 // pred_fallthru
      _
    %p1016 = scmp.gt.s32.totalorder 0, 0
    // Predicated region
    $region22: #{image_encoder_clip_forward.1} parent=1 // pred_check
      %p1017 = pneg %p1016
    $region23: #{image_encoder_clip_forward.1} parent=1 // pred_check_branch
      %1019 = sbr.rel (%p1017) target = $region25
    $region24: #{image_encoder_clip_forward.1} parent=1 // pred_region
      %v1020 = vld [vmem:[%s3] sm:$0xff]
      %v1021 = vld [vmem:[%s3 + $0x8] sm:$0xff]
      %v1022 = vld [vmem:[%s3 + $0x10] sm:$0xff]
      %v1023 = vld [vmem:[%s3 + $0x18] sm:$0xff]
      %v1024 = vadd.f32 %v1020, %v984
      %v1025 = vadd.f32 %v1021, %v986
      %v1026 = vadd.f32 %v1022, %v988
      %v1027 = vadd.f32 %v1023, %v990
      %1028 = vst [vmem:[%s3] sm:$0xff] %v1024
      %1029 = vst [vmem:[%s3 + $0x8] sm:$0xff] %v1025
      %1030 = vst [vmem:[%s3 + $0x10] sm:$0xff] %v1026
      %1031 = vst [vmem:[%s3 + $0x18] sm:$0xff] %v1027
    $region25: #{image_encoder_clip_forward.1} parent=1 // pred_fallthru
      _
    // Predicated region
    $region26: #{image_encoder_clip_forward.1} parent=1 // pred_check
      _
    $region27: #{image_encoder_clip_forward.1} parent=1 // pred_check_branch
      %1033 = sbr.rel (0) target = $region29
    $region28: #{image_encoder_clip_forward.1} parent=1 // pred_region
      _
    $region29: #{image_encoder_clip_forward.1} parent=1 // pred_fallthru
      _
    // Predicated region
    $region30: #{image_encoder_clip_forward.1} parent=1 // pred_check
      _
    $region31: #{image_encoder_clip_forward.1} parent=1 // pred_check_branch
      %1035 = sbr.rel (0) target = $region33
    $region32: #{image_encoder_clip_forward.1} parent=1 // pred_region
      _
    $region33: #{image_encoder_clip_forward.1} parent=1 // pred_fallthru
      _
    %1036 = vsyncpa [#allocation3], 1

</llo_original>
